<compile_context>
chip_gen: v7x
topology: tpu7x:2x2x1
jax: 0.10.0
libtpu: 0.0.40
codegen_flags: <defaults>
</compile_context>

<pallas_src>
import jax
import jax.numpy as jnp
from jax import lax
from jax.experimental import pallas as pl
from jax.experimental.pallas import tpu as pltpu


def _round_up(x, m):
    return ((x + m - 1) // m) * m


def _cdiv(a, b):
    return (a + b - 1) // b


def _vmem_capacity_bytes():
    """Physical VMEM of the current TPU generation; conservative fallback (v7x = 64 MiB)."""
    try:
        info = pltpu.get_tpu_info()
        cap = getattr(info, "vmem_capacity_bytes", None)
        if cap:
            return int(cap)
    except Exception:
        pass
    return 64 * 1024 * 1024


# ----------------------------- Pallas kernel ------------------------------ #
def _make_kernel(nb, tile_m, valid_pixels):
    def kernel(f1_ref, f2_ref, w1_ref, w2_ref, b_ref, o_ref):
        # f1_ref: (nb, C1, TM)   f2_ref: (nb, C2, TM)   o_ref: (nb, Cout, TM)
        # w1_ref: (Cout, C1)     w2_ref: (Cout, C2)     b_ref: (Cout, 1) f32
        i = pl.program_id(1)
        # Flat (per-image) pixel index of every lane of this tile.  Pixels at or
        # beyond `valid_pixels` lie in the zero-pad / cropped-away region of f2
        # (also covers the tail-tile garbage lanes), so their f2 values are zeroed.
        pix = i * tile_m + lax.broadcasted_iota(jnp.int32, (1, tile_m), 1)
        keep = pix < valid_pixels
        w1 = w1_ref[...]
        w2 = w2_ref[...]
        bias = b_ref[...]                        # (Cout, 1) f32 -> broadcasts over lanes
        for bb in range(nb):                     # nb is small & static -> unrolled
            x1 = f1_ref[bb]                      # (C1, TM)
            x2 = jnp.where(keep, f2_ref[bb], 0)  # (C2, TM), pad/crop region -> 0
            acc = jnp.dot(w1, x1, preferred_element_type=jnp.float32)
            acc = acc + jnp.dot(w2, x2, preferred_element_type=jnp.float32)
            acc = acc + bias
            o_ref[bb] = acc.astype(o_ref.dtype)  # lane-dense stores (TM % 128 == 0)
    return kernel


def sspcat_conv1x1_pallas(f1, f2, w1, w2, b, valid_pixels, *,
                          tile_pixels=None, batch_block=None):
    """Fused concat + 1x1 conv (channels-first, pixel axis lane-dense).

    f1: (N, C1, M)   pixel-flattened x[0]                 (M = H*W)
    f2: (N, C2, M2)  pixel-flattened, row stride already W (M2 = H2*W)
    valid_pixels: flat positions p <  valid_pixels take f2 from f2[..., p];
                  positions      p >= valid_pixels use 0 (zero-pad / crop region).
    w1: (Cout, C1)   w2: (Cout, C2)   b: (Cout,)
    returns (N, Cout, M) in f1.dtype
    """
    N, C1, M = f1.shape
    _, C2, M2 = f2.shape
    Cout = w1.shape[0]
    itemsize = jnp.dtype(f1.dtype).itemsize

    # ---------------- tile sizing (HBM amortisation + VMEM budget) ----------------
    vmem_cap = _vmem_capacity_bytes()
    vmem_budget = (vmem_cap * 3) // 5                       # headroom for scratch / pipeline
    hbm_bytes_per_px = (C1 + C2 + Cout) * itemsize          # in + out HBM bytes per pixel
    vmem_bytes_per_px = 2 * hbm_bytes_per_px + 4 * Cout     # 2x-buffered blocks + f32 acc
    target_px = max(256, (3 * 1024 * 1024) // hbm_bytes_per_px)   # ~3 MiB of HBM per step
    vmem_px = max(256, vmem_budget // vmem_bytes_per_px)
    px_per_step = min(target_px, vmem_px)

    m_round = _round_up(M, 128)
    if tile_pixels is not None:
        tile_m = max(128, _round_up(int(tile_pixels), 128))
    else:
        tile_m = max(128, (px_per_step // 128) * 128)
    tile_m = min(tile_m, m_round)
    if tile_m > M:                              # keep the lane-dim block <= the array
        tile_m = M if M < 128 else (M // 128) * 128

    if batch_block is not None:
        nb = int(batch_block)
    else:
        nb = px_per_step // max(1, tile_m)
    nb = max(1, min(nb, N, 8))                  # small static unroll inside the kernel
    while N % nb:                               # exact batch blocks (no partial leading dim)
        nb -= 1

    # Enough grid steps for both v7x TensorCores / pipelining, but never below
    # ~2048 px per step (per-step overhead would dominate again).
    if tile_pixels is None:
        MIN_STEPS, MIN_PX = 8, 2048
        while (_cdiv(N, nb) * _cdiv(M, tile_m) < MIN_STEPS) and nb * tile_m > MIN_PX:
            if nb > 1:
                nb = max(1, nb // 2)
                while N % nb:
                    nb -= 1
            elif tile_m > 128:
                tile_m = max(128, _round_up(tile_m // 2, 128))
                if tile_m > M and M >= 128:
                    tile_m = (M // 128) * 128
            else:
                break

    # ------------- f2 flat-length fix-ups (no full (H, W) pad in HBM) -------------
    if tile_m % 128 != 0:
        # Tiny image (tile == whole image, M < 128): make f2's flat length exactly M
        # so every block dim equals its full array dim.
        if M2 < M:
            f2 = jnp.pad(f2, ((0, 0), (0, 0), (0, M - M2)))
        elif M2 > M:
            f2 = f2[:, :, :M]
        M2 = M
    elif M2 < tile_m:
        # f2's valid data is smaller than a single tile: pad it up to one tile
        # (small-feature-map regime, tiny copy).  Larger f2 is handled fully in-kernel.
        f2 = jnp.pad(f2, ((0, 0), (0, 0), (0, tile_m - M2)))
        M2 = tile_m
    n_f2_blocks = _cdiv(M2, tile_m)

    grid = (N // nb, _cdiv(M, tile_m))

    # ---------------- VMEM limit / cost estimate ----------------
    step_vmem = (2 * nb * tile_m * (C1 + C2 + Cout) * itemsize    # double-buffered blocks
                 + 2 * (Cout * (C1 + C2) + Cout) * 4              # weights + bias
                 + nb * tile_m * Cout * 4)                        # f32 accumulator headroom
    vmem_limit = max(step_vmem + (4 << 20), 32 << 20)
    vmem_limit = int(min(vmem_limit, max(vmem_cap - (2 << 20), 32 << 20)))

    cost = pl.CostEstimate(
        flops=2 * N * M * Cout * (C1 + C2),
        transcendentals=0,
        bytes_accessed=(N * M * (C1 + Cout) + N * M2 * C2) * itemsize
        + (Cout * (C1 + C2) + Cout) * itemsize,
    )

    kernel = _make_kernel(nb, tile_m, int(valid_pixels))
    b2 = b.reshape(Cout, 1).astype(jnp.float32)

    # f2 may have fewer (or more) pixel blocks than the output grid: clamp its block
    # index; out-of-range tiles are fully masked in-kernel via `valid_pixels`.
    f2_index_map = lambda n, i, _nblk=n_f2_blocks: (n, 0, jnp.minimum(i, _nblk - 1))

    return pl.pallas_call(
        kernel,
        out_shape=jax.ShapeDtypeStruct((N, Cout, M), f1.dtype),
        grid_spec=pltpu.PrefetchScalarGridSpec(
            num_scalar_prefetch=0,
            grid=grid,
            in_specs=[
                pl.BlockSpec((nb, C1, tile_m), lambda n, i: (n, 0, i)),
                pl.BlockSpec((nb, C2, tile_m), f2_index_map),
                # TODO(synk): for production channel counts, single-buffer the
                # constant-index weight/bias blocks (pipeline_mode=pl.Buffered(1))
                # to free VMEM for a larger pixel tile; negligible at these sizes.
                pl.BlockSpec((Cout, C1), lambda n, i: (0, 0)),
                pl.BlockSpec((Cout, C2), lambda n, i: (0, 0)),
                pl.BlockSpec((Cout, 1), lambda n, i: (0, 0)),
            ],
            out_specs=pl.BlockSpec((nb, Cout, tile_m), lambda n, i: (n, 0, i)),
        ),
        compiler_params=pltpu.CompilerParams(
            dimension_semantics=("parallel", "parallel"),
            vmem_limit_bytes=vmem_limit,
        ),
        cost_estimate=cost,
    )(f1, f2, w1, w2, b2)


# ------------------------------ glue (JAX) -------------------------------- #
def pad_4d_tensors(t1, t2):
    """Mirror of the PyTorch helper (used by the reference): zero-pad at the end or
    crop t2 so its spatial dims match t1's (NCHW)."""
    s1_h, s1_w = t1.shape[2], t1.shape[3]
    s2_h = t2.shape[2]
    if s1_h > s2_h:
        length = s1_h - s2_h
        t2 = jnp.pad(t2, ((0, 0), (0, 0), (0, length), (0, length)))
    if s1_h < s2_h:
        t2 = t2[:, :, 0:s1_h, 0:s1_w]
    return t1, t2


class SSPCATPallas:
    """SSPCAT: concat x[0] with x[1][0][index] (spatially aligned), then 1x1 conv.

    The channel concat is fused into the kernel by splitting the conv weight along
    Cin; the spatial zero-pad / crop of the second feature map is handled in-kernel
    (pixel-validity mask + clamped index_map), so it never costs a full extra HBM pass."""

    def __init__(self, ichannel, ochannel, index, key):
        self.index = index
        kw, kb = jax.random.split(key)
        # Conv2d(ichannel, ochannel, k=1): weight (ochannel, ichannel, 1, 1), bias (ochannel,)
        bound = 1.0 / (ichannel ** 0.5)
        self.weight = jax.random.uniform(
            kw, (ochannel, ichannel, 1, 1), jnp.float32, -bound, bound)
        self.bias = jax.random.uniform(kb, (ochannel,), jnp.float32, -bound, bound)

    def __call__(self, x, *, tile_pixels=None, batch_block=None):
        f1 = x[0]
        cf = x[1][0][self.index]
        dtype = f1.dtype                 # keep the network dtype (bf16 stays bf16)
        f1 = f1.astype(dtype)
        f2 = cf.astype(dtype)

        N, C1, H, W = f1.shape
        _, C2, H2, W2 = f2.shape
        Cout = self.weight.shape[0]
        assert self.weight.shape[1] == C1 + C2, "conv in-channels must equal C1 + C2"
        M = H * W

        # Mirror pad_4d_tensors semantics without materialising the full (H, W) pad.
        if H > H2:
            length = H - H2
            assert W2 + length == W, "pad helper assumes equal H/W deltas"
            # width-only adjust (H2*W elements, not H*W); rows >= H2 are produced
            # in-kernel as zeros via the validity mask.
            f2 = jnp.pad(f2, ((0, 0), (0, 0), (0, 0), (0, W - W2)))
            valid_rows = H2
        elif H < H2:
            assert W2 >= W, "crop helper assumes f2 at least as wide as f1"
            if W2 > W:
                f2 = f2[:, :, :, :W]     # width crop only; extra rows never contribute
            valid_rows = H
        else:
            assert W == W2, "spatial shapes must match when heights match"
            valid_rows = H

        H2k = f2.shape[2]
        f1_flat = f1.reshape(N, C1, M)            # free, contiguous reshape
        f2_flat = f2.reshape(N, C2, H2k * W)      # row stride == W -> same flat indexing
        valid_pixels = valid_rows * W

        # Split the 1x1-conv weight along Cin so the concat fuses into the kernel.
        w = self.weight[:, :, 0, 0]
        w1 = w[:, :C1].astype(dtype)
        w2 = w[:, C1:C1 + C2].astype(dtype)

        out = sspcat_conv1x1_pallas(
            f1_flat, f2_flat, w1, w2, self.bias, valid_pixels,
            tile_pixels=tile_pixels, batch_block=batch_block)
        return out.reshape(N, Cout, H, W)


# ------------------------------ reference --------------------------------- #
def reference_forward(mod, x):
    cf = x[1][0][mod.index]
    f1, f2 = pad_4d_tensors(x[0], cf)
    cat = jnp.concatenate((f1, f2), axis=1).astype(x[0].dtype)
    out = jnp.einsum("nchw,oc->nohw", cat, mod.weight[:, :, 0, 0]) \
        + mod.bias[None, :, None, None]
    return out.astype(x[0].dtype)


# -------------------------------- main ------------------------------------ #
if __name__ == "__main__":
    key = jax.random.PRNGKey(0)
    k1, k2, k3, k4, k5 = jax.random.split(key, 5)

    # --- primary small test (pad path, whole image in one tile, batched nb) ---
    N, C1, H, W = 2, 4, 16, 16
    C2, H2, W2 = 4, 8, 8
    ichannel, ochannel, index = C1 + C2, 8, 1

    x0 = jax.random.normal(k1, (N, C1, H, W), jnp.float32)
    cf_other = jax.random.normal(k2, (N, C2, H2, W2), jnp.float32)
    cf = jax.random.normal(k3, (N, C2, H2, W2), jnp.float32)
    x = (x0, [[cf_other, cf]])

    mod = SSPCATPallas(ichannel, ochannel, index, jax.random.PRNGKey(42))
    out = jax.block_until_ready(mod(x))
    ref = reference_forward(mod, x)
    assert out.shape == (N, ochannel, H, W), out.shape
    assert jnp.allclose(out, ref, atol=1e-5, rtol=1e-5), float(jnp.max(jnp.abs(out - ref)))

    # --- second test: multi-tile grid with a tail, exercising the in-kernel
    #     (no full HBM copy) handling of the f2 height pad + clamped index_map ---
    N2b, H_b, W_b, H2_b, W2_b = 2, 32, 32, 16, 16
    x0b = jax.random.normal(k4, (N2b, C1, H_b, W_b), jnp.float32)
    cfb = jax.random.normal(k5, (N2b, C2, H2_b, W2_b), jnp.float32)
    xb = (x0b, [[cfb, cfb]])
    outb = jax.block_until_ready(mod(xb, tile_pixels=384, batch_block=1))
    refb = reference_forward(mod, xb)
    assert outb.shape == (N2b, ochannel, H_b, W_b), outb.shape
    assert jnp.allclose(outb, refb, atol=1e-5, rtol=1e-5), float(jnp.max(jnp.abs(outb - refb)))

    print("KERNEL_OK")
</pallas_src>

<mosaic_0001>
module attributes {stable_mosaic.version = 11 : i64} {
  func.func @kernel(%arg0: i32, %arg1: i32, %arg2: memref<2x4x256xf32, #tpu.memory_space<vmem>>, %arg3: memref<2x4x256xf32, #tpu.memory_space<vmem>>, %arg4: memref<8x4xf32, #tpu.memory_space<vmem>>, %arg5: memref<8x4xf32, #tpu.memory_space<vmem>>, %arg6: memref<8x1xf32, #tpu.memory_space<vmem>>, %arg7: memref<2x8x256xf32, #tpu.memory_space<vmem>>) attributes {dimension_semantics = [#tpu.dimension_semantics<parallel>, #tpu.dimension_semantics<parallel>], iteration_bounds = array<i64: 1, 1>, scalar_prefetch = 0 : i64, scratch_operands = 0 : i64, tpu.core_type = #tpu.core_type<tc>, window_params = [{transform_indices = @transform_0, window_bounds = array<i64: 2, 4, 256>}, {transform_indices = @transform_1, window_bounds = array<i64: 2, 4, 256>}, {pipeline_mode = #tpu.pipeline_mode<synchronous>, transform_indices = @transform_2, window_bounds = array<i64: 8, 4>}, {pipeline_mode = #tpu.pipeline_mode<synchronous>, transform_indices = @transform_3, window_bounds = array<i64: 8, 4>}, {pipeline_mode = #tpu.pipeline_mode<synchronous>, transform_indices = @transform_4, window_bounds = array<i64: 8, 1>}, {transform_indices = @transform_5, window_bounds = array<i64: 2, 8, 256>}]} {
    %c256_i32 = arith.constant 256 : i32
    %0 = arith.muli %arg1, %c256_i32 : i32
    %1 = tpu.iota {dimensions = array<i32: 1>} : vector<1x256xi32>
    %2 = vector.broadcast %0 : i32 to vector<1x256xi32>
    %3 = arith.addi %2, %1 : vector<1x256xi32>
    %c128_i32 = arith.constant 128 : i32
    %4 = vector.broadcast %c128_i32 : i32 to vector<1x256xi32>
    %5 = arith.cmpi slt, %3, %4 : vector<1x256xi32>
    %c0 = arith.constant 0 : index
    %c0_0 = arith.constant 0 : index
    %6 = vector.load %arg4[%c0, %c0_0] : memref<8x4xf32, #tpu.memory_space<vmem>>, vector<8x4xf32>
    %c0_1 = arith.constant 0 : index
    %c0_2 = arith.constant 0 : index
    %7 = vector.load %arg5[%c0_1, %c0_2] : memref<8x4xf32, #tpu.memory_space<vmem>>, vector<8x4xf32>
    %c0_3 = arith.constant 0 : index
    %c0_4 = arith.constant 0 : index
    %8 = vector.load %arg6[%c0_3, %c0_4] : memref<8x1xf32, #tpu.memory_space<vmem>>, vector<8x1xf32>
    %c0_5 = arith.constant 0 : index
    %c0_6 = arith.constant 0 : index
    %c0_7 = arith.constant 0 : index
    %9 = vector.load %arg2[%c0_5, %c0_6, %c0_7] : memref<2x4x256xf32, #tpu.memory_space<vmem>>, vector<1x4x256xf32>
    %10 = vector.shape_cast %9 : vector<1x4x256xf32> to vector<4x256xf32>
    %c0_8 = arith.constant 0 : index
    %c0_9 = arith.constant 0 : index
    %c0_10 = arith.constant 0 : index
    %11 = vector.load %arg3[%c0_8, %c0_9, %c0_10] : memref<2x4x256xf32, #tpu.memory_space<vmem>>, vector<1x4x256xf32>
    %12 = vector.shape_cast %11 : vector<1x4x256xf32> to vector<4x256xf32>
    %c0_i32 = arith.constant 0 : i32
    %13 = arith.sitofp %c0_i32 : i32 to f32
    %14 = vector.shape_cast %5 : vector<1x256xi1> to vector<1x256xi1>
    %15 = vector.broadcast %14 : vector<1x256xi1> to vector<4x256xi1>
    %16 = vector.broadcast %13 : f32 to vector<4x256xf32>
    %17 = arith.select %15, %12, %16 : vector<4x256xi1>, vector<4x256xf32>
    %cst = arith.constant dense<0.000000e+00> : vector<8x256xf32>
    %18 = tpu.matmul %6, %10, %cst {dimension_numbers = #tpu.dot_dimension_numbers<[1], [0], [0], [1], [0, 0, 1, 1], [], []>} : vector<8x4xf32>, vector<4x256xf32>, vector<8x256xf32> -> vector<8x256xf32>
    %cst_11 = arith.constant dense<0.000000e+00> : vector<8x256xf32>
    %19 = tpu.matmul %7, %17, %cst_11 {dimension_numbers = #tpu.dot_dimension_numbers<[1], [0], [0], [1], [0, 0, 1, 1], [], []>} : vector<8x4xf32>, vector<4x256xf32>, vector<8x256xf32> -> vector<8x256xf32>
    %20 = arith.addf %18, %19 : vector<8x256xf32>
    %21 = vector.broadcast %8 : vector<8x1xf32> to vector<8x256xf32>
    %22 = arith.addf %20, %21 : vector<8x256xf32>
    %c0_12 = arith.constant 0 : index
    %c0_13 = arith.constant 0 : index
    %c0_14 = arith.constant 0 : index
    %23 = vector.load %arg7[%c0_12, %c0_13, %c0_14] : memref<2x8x256xf32, #tpu.memory_space<vmem>>, vector<1x8x256xf32>
    %24 = vector.shape_cast %23 : vector<1x8x256xf32> to vector<8x256xf32>
    %25 = vector.shape_cast %22 : vector<8x256xf32> to vector<1x8x256xf32>
    tpu.vector_store %arg7[%c0_12, %c0_13, %c0_14], %25 {strides = array<i32>} : memref<2x8x256xf32, #tpu.memory_space<vmem>>, vector<1x8x256xf32>,
    %c1 = arith.constant 1 : index
    %c0_15 = arith.constant 0 : index
    %c0_16 = arith.constant 0 : index
    %26 = vector.load %arg2[%c1, %c0_15, %c0_16] : memref<2x4x256xf32, #tpu.memory_space<vmem>>, vector<1x4x256xf32>
    %27 = vector.shape_cast %26 : vector<1x4x256xf32> to vector<4x256xf32>
    %c1_17 = arith.constant 1 : index
    %c0_18 = arith.constant 0 : index
    %c0_19 = arith.constant 0 : index
    %28 = vector.load %arg3[%c1_17, %c0_18, %c0_19] : memref<2x4x256xf32, #tpu.memory_space<vmem>>, vector<1x4x256xf32>
    %29 = vector.shape_cast %28 : vector<1x4x256xf32> to vector<4x256xf32>
    %c0_i32_20 = arith.constant 0 : i32
    %30 = arith.sitofp %c0_i32_20 : i32 to f32
    %31 = vector.shape_cast %5 : vector<1x256xi1> to vector<1x256xi1>
    %32 = vector.broadcast %31 : vector<1x256xi1> to vector<4x256xi1>
    %33 = vector.broadcast %30 : f32 to vector<4x256xf32>
    %34 = arith.select %32, %29, %33 : vector<4x256xi1>, vector<4x256xf32>
    %cst_21 = arith.constant dense<0.000000e+00> : vector<8x256xf32>
    %35 = tpu.matmul %6, %27, %cst_21 {dimension_numbers = #tpu.dot_dimension_numbers<[1], [0], [0], [1], [0, 0, 1, 1], [], []>} : vector<8x4xf32>, vector<4x256xf32>, vector<8x256xf32> -> vector<8x256xf32>
    %cst_22 = arith.constant dense<0.000000e+00> : vector<8x256xf32>
    %36 = tpu.matmul %7, %34, %cst_22 {dimension_numbers = #tpu.dot_dimension_numbers<[1], [0], [0], [1], [0, 0, 1, 1], [], []>} : vector<8x4xf32>, vector<4x256xf32>, vector<8x256xf32> -> vector<8x256xf32>
    %37 = arith.addf %35, %36 : vector<8x256xf32>
    %38 = vector.broadcast %8 : vector<8x1xf32> to vector<8x256xf32>
    %39 = arith.addf %37, %38 : vector<8x256xf32>
    %c1_23 = arith.constant 1 : index
    %c0_24 = arith.constant 0 : index
    %c0_25 = arith.constant 0 : index
    %40 = vector.load %arg7[%c1_23, %c0_24, %c0_25] : memref<2x8x256xf32, #tpu.memory_space<vmem>>, vector<1x8x256xf32>
    %41 = vector.shape_cast %40 : vector<1x8x256xf32> to vector<8x256xf32>
    %42 = vector.shape_cast %39 : vector<8x256xf32> to vector<1x8x256xf32>
    tpu.vector_store %arg7[%c1_23, %c0_24, %c0_25], %42 {strides = array<i32>} : memref<2x8x256xf32, #tpu.memory_space<vmem>>, vector<1x8x256xf32>,
    return
  }
  func.func @transform_0(%arg0: i32, %arg1: i32) -> (i32, i32, i32) {
    %c0_i32 = arith.constant 0 : i32
    %c0_i32_0 = arith.constant 0 : i32
    return %arg0, %c0_i32, %arg1 : i32, i32, i32
  }
  func.func @transform_1(%arg0: i32, %arg1: i32) -> (i32, i32, i32) {
    %c0_i32 = arith.constant 0 : i32
    %0 = arith.minsi %arg1, %c0_i32 : i32
    %c0_i32_0 = arith.constant 0 : i32
    %c0_i32_1 = arith.constant 0 : i32
    return %arg0, %c0_i32_0, %0 : i32, i32, i32
  }
  func.func @transform_2(%arg0: i32, %arg1: i32) -> (i32, i32) {
    %c0_i32 = arith.constant 0 : i32
    %c0_i32_0 = arith.constant 0 : i32
    %c0_i32_1 = arith.constant 0 : i32
    return %c0_i32, %c0_i32_0 : i32, i32
  }
  func.func @transform_3(%arg0: i32, %arg1: i32) -> (i32, i32) {
    %c0_i32 = arith.constant 0 : i32
    %c0_i32_0 = arith.constant 0 : i32
    %c0_i32_1 = arith.constant 0 : i32
    return %c0_i32, %c0_i32_0 : i32, i32
  }
  func.func @transform_4(%arg0: i32, %arg1: i32) -> (i32, i32) {
    %c0_i32 = arith.constant 0 : i32
    %c0_i32_0 = arith.constant 0 : i32
    %c0_i32_1 = arith.constant 0 : i32
    return %c0_i32, %c0_i32_0 : i32, i32
  }
  func.func @transform_5(%arg0: i32, %arg1: i32) -> (i32, i32, i32) {
    %c0_i32 = arith.constant 0 : i32
    %c0_i32_0 = arith.constant 0 : i32
    return %arg0, %c0_i32, %arg1 : i32, i32, i32
  }
}

</mosaic_0001>

<llo_original>
// kernel: tpu_custom_call.1
$region0: #{tpu_custom_call.1}
  #allocation0 [shape = 'u32[]', space=smem, size = 0x4, offset = 0x4, fixed_abs, tag = 'smem constant byte address 0x4 - core index']
  #allocation1 [shape = 'u32[144,128]{1,0:T(1,128)}', space=vmem, size = 0x12000, scoped, tag = 'internal scratch']
  %s0 = inlined_call_operand.vmem [shape: f32[2,4,256], index: 0, kind: input, shape index: {}]
  %s1 = inlined_call_operand.vmem [shape: f32[2,4,256], index: 1, kind: input, shape index: {}]
  %s2 = inlined_call_operand.vmem [shape: f32[8,4], index: 2, kind: input, shape index: {}]
  %s3 = inlined_call_operand.vmem [shape: f32[8,4], index: 3, kind: input, shape index: {}]
  %s4 = inlined_call_operand.vmem [shape: f32[8,1], index: 4, kind: input, shape index: {}]
  %s5 = inlined_call_operand.hbm [shape: f32[2,8,256], index: 5, kind: output, shape index: {}]
  %s6 = sld [smem:[#allocation0]]
  $region30: #{tpu_custom_call.1} parent=0
    _
  %s8 = ssub.s32 1, %s6
  %s9 = scalar_select 0, %s8, %s6
  $region1: #{tpu_custom_call.1} parent=0
    #allocation2 [shape = 'u8[16384]{0}', space=vmem, size = 0x4000, scoped, tag = 'output window, operand 0, single buffered']
    #allocation3 [shape = 's32[1]{0}', space=sflag, size = 0x4, scoped, tag = 'scoped memory for tpu_custom_call.1']
    %10 = vsyncpa [#allocation3], 0
    // Predicated region
    $region2: #{tpu_custom_call.1} parent=1 // pred_check
      _
    $region3: #{tpu_custom_call.1} parent=1 // pred_check_branch
      %12 = sbr.rel (0) target = $region5
    $region4: #{tpu_custom_call.1} parent=1 // pred_region
      _
    $region5: #{tpu_custom_call.1} parent=1 // pred_fallthru
      _
    // Predicated region
    $region6: #{tpu_custom_call.1} parent=1 // pred_check
      _
    $region7: #{tpu_custom_call.1} parent=1 // pred_check_branch
      %14 = sbr.rel (0) target = $region9
    $region8: #{tpu_custom_call.1} parent=1 // pred_region
      _
    $region9: #{tpu_custom_call.1} parent=1 // pred_fallthru
      _
    // Predicated region
    $region10: #{tpu_custom_call.1} parent=1 // pred_check
      _
    $region11: #{tpu_custom_call.1} parent=1 // pred_check_branch
      %16 = sbr.rel (0) target = $region13
    $region12: #{tpu_custom_call.1} parent=1 // pred_region
      _
    $region13: #{tpu_custom_call.1} parent=1 // pred_fallthru
      _
    // Predicated region
    $region14: #{tpu_custom_call.1} parent=1 // pred_check
      _
    $region15: #{tpu_custom_call.1} parent=1 // pred_check_branch
      %18 = sbr.rel (0) target = $region17
    $region16: #{tpu_custom_call.1} parent=1 // pred_region
      _
    $region17: #{tpu_custom_call.1} parent=1 // pred_fallthru
      _
    // Predicated region
    $region18: #{tpu_custom_call.1} parent=1 // pred_check
      _
    $region19: #{tpu_custom_call.1} parent=1 // pred_check_branch
      %20 = sbr.rel (0) target = $region21
    $region20: #{tpu_custom_call.1} parent=1 // pred_region
      _
    $region21: #{tpu_custom_call.1} parent=1 // pred_fallthru
      _
    %s21 = smul.u32 0, 256
    %v22 = vlaneseq
    %v23 = vand.u32 %v22, 127
    %v24 = vadd.s32 %v23, 128
    %v25 = vstv %s21
    %v26 = vadd.s32 %v25, %v23
    %v27 = vadd.s32 %v25, %v24
    %vm28 = vcmp.lt.s32.totalorder %v26, 128
    %vm29 = vcmp.lt.s32.totalorder %v27, 128
    %v30 = vld [vmem:[%s2] sm:$0xff]
    %v31 = vld [vmem:[%s3] sm:$0xff]
    %v32 = vld [vmem:[%s4] sm:$0xff]
    %v33 = vld [vmem:[%s0] sm:$0xff]
    %v34 = vld [vmem:[%s1] sm:$0xff]
    %v35 = vsel %vm28, 1, 0
    %v36 = vsel %vm29, 1, 0
    %vm37 = vcmp.eq.s32.totalorder %v35, 1
    %vm38 = vcmp.eq.s32.totalorder %v36, 1
    %v40 = vcombine.high %v34, %v34
    %v42 = vsel %vm37, %v34, 0.0
    %v43 = vsel %vm38, %v40, 0.0
    %vm44 = vcmask 31744
    %v46 = vsel %vm44, %v31, 0
    %vm48 = vcmask 1043456
    %v50 = vsel %vm48, %v42, 0
    %v53 = vsel %vm48, %v43, 0
    %55 = vmatprep.subr.mxu0 %v53
    %56 = vmatpush1.msra.mxu0 %v50
    %57 = vmatprep.subr.mxu0 0.0
    %58 = vmatpush1.msra.mxu0 0.0
    %59 = vmatprep.subr.mxu0 0.0
    %60 = vmatpush1.msra.mxu0 0.0
    %61 = vmatprep.subr.mxu0 0.0
    %62 = vmatpush1.msra.mxu0 0.0
    %63 = vmatprep.subr.mxu0 0.0
    %64 = vmatpush1.msra.mxu0 0.0
    %65 = vmatprep.subr.mxu0 0.0
    %66 = vmatpush1.msra.mxu0 0.0
    %67 = vmatprep.subr.mxu0 0.0
    %68 = vmatpush1.msra.mxu0 0.0
    %69 = vmatprep.subr.mxu0 0.0
    %70 = vmatpush1.msra.mxu0 0.0
    %71 = vmatprep.subr.mxu0 0.0
    %72 = vmatpush1.msra.mxu0 0.0
    %73 = vmatprep.subr.mxu0 0.0
    %74 = vmatpush1.msra.mxu0 0.0
    %75 = vmatprep.subr.mxu0 0.0
    %76 = vmatpush1.msra.mxu0 0.0
    %77 = vmatprep.subr.mxu0 0.0
    %78 = vmatpush1.msra.mxu0 0.0
    %79 = vmatprep.subr.mxu0 0.0
    %80 = vmatpush1.msra.mxu0 0.0
    %81 = vmatprep.subr.mxu0 0.0
    %82 = vmatpush1.msra.mxu0 0.0
    %83 = vmatprep.subr.mxu0 0.0
    %84 = vmatpush1.msra.mxu0 0.0
    %85 = vmatprep.subr.mxu0 0.0
    %86 = vmatpush1.msra.mxu0 0.0
    %87 = vmatprep.subr.mxu0 0.0
    %88 = vmatpush1.msra.mxu0 0.0
    %89 = vmatprep.subr.mxu0 0.0
    %90 = vmatpush1.msra.mxu0 0.0
    %91 = vmatprep.subr.mxu0 0.0
    %92 = vmatpush1.msra.mxu0 0.0
    %93 = vmatprep.subr.mxu0 0.0
    %94 = vmatpush1.msra.mxu0 0.0
    %95 = vmatprep.subr.mxu0 0.0
    %96 = vmatpush1.msra.mxu0 0.0
    %97 = vmatprep.subr.mxu0 0.0
    %98 = vmatpush1.msra.mxu0 0.0
    %99 = vmatprep.subr.mxu0 0.0
    %100 = vmatpush1.msra.mxu0 0.0
    %101 = vmatprep.subr.mxu0 0.0
    %102 = vmatpush1.msra.mxu0 0.0
    %103 = vmatprep.subr.mxu0 0.0
    %104 = vmatpush1.msra.mxu0 0.0
    %105 = vmatprep.subr.mxu0 0.0
    %106 = vmatpush1.msra.mxu0 0.0
    %107 = vmatprep.subr.mxu0 0.0
    %108 = vmatpush1.msra.mxu0 0.0
    %109 = vmatprep.subr.mxu0 0.0
    %110 = vmatpush1.msra.mxu0 0.0
    %111 = vmatprep.subr.mxu0 0.0
    %112 = vmatpush1.msra.mxu0 0.0
    %113 = vmatprep.subr.mxu0 0.0
    %114 = vmatpush1.msra.mxu0 0.0
    %115 = vmatprep.subr.mxu0 0.0
    %116 = vmatpush1.msra.mxu0 0.0
    %117 = vmatprep.subr.mxu0 0.0
    %118 = vmatpush1.msra.mxu0 0.0
    %119 = vmatprep.mubr.f32.mxu0 0.0
    %120 = vmatmul.mubr.f32.gmra.mrb[0].mxu0 %v46
    %v121 = vpop.f32.mrb[0].mxu0
    %v122 = vadd.f32 0.0, %v121
    %v123 = vpop.f32.mrb[0].mxu0
    %v124 = vadd.f32 0.0, %v123
    %125 = vdwg.mxu0
    %v127 = vcombine.high %v33, %v33
    %v129 = vsel %vm44, %v30, 0
    %v131 = vsel %vm48, %v33, 0
    %v133 = vsel %vm48, %v127, 0
    %135 = vmatprep.subr.mxu0 %v133
    %136 = vmatpush1.msra.mxu0 %v131
    %137 = vmatprep.subr.mxu0 0.0
    %138 = vmatpush1.msra.mxu0 0.0
    %139 = vmatprep.subr.mxu0 0.0
    %140 = vmatpush1.msra.mxu0 0.0
    %141 = vmatprep.subr.mxu0 0.0
    %142 = vmatpush1.msra.mxu0 0.0
    %143 = vmatprep.subr.mxu0 0.0
    %144 = vmatpush1.msra.mxu0 0.0
    %145 = vmatprep.subr.mxu0 0.0
    %146 = vmatpush1.msra.mxu0 0.0
    %147 = vmatprep.subr.mxu0 0.0
    %148 = vmatpush1.msra.mxu0 0.0
    %149 = vmatprep.subr.mxu0 0.0
    %150 = vmatpush1.msra.mxu0 0.0
    %151 = vmatprep.subr.mxu0 0.0
    %152 = vmatpush1.msra.mxu0 0.0
    %153 = vmatprep.subr.mxu0 0.0
    %154 = vmatpush1.msra.mxu0 0.0
    %155 = vmatprep.subr.mxu0 0.0
    %156 = vmatpush1.msra.mxu0 0.0
    %157 = vmatprep.subr.mxu0 0.0
    %158 = vmatpush1.msra.mxu0 0.0
    %159 = vmatprep.subr.mxu0 0.0
    %160 = vmatpush1.msra.mxu0 0.0
    %161 = vmatprep.subr.mxu0 0.0
    %162 = vmatpush1.msra.mxu0 0.0
    %163 = vmatprep.subr.mxu0 0.0
    %164 = vmatpush1.msra.mxu0 0.0
    %165 = vmatprep.subr.mxu0 0.0
    %166 = vmatpush1.msra.mxu0 0.0
    %167 = vmatprep.subr.mxu0 0.0
    %168 = vmatpush1.msra.mxu0 0.0
    %169 = vmatprep.subr.mxu0 0.0
    %170 = vmatpush1.msra.mxu0 0.0
    %171 = vmatprep.subr.mxu0 0.0
    %172 = vmatpush1.msra.mxu0 0.0
    %173 = vmatprep.subr.mxu0 0.0
    %174 = vmatpush1.msra.mxu0 0.0
    %175 = vmatprep.subr.mxu0 0.0
    %176 = vmatpush1.msra.mxu0 0.0
    %177 = vmatprep.subr.mxu0 0.0
    %178 = vmatpush1.msra.mxu0 0.0
    %179 = vmatprep.subr.mxu0 0.0
    %180 = vmatpush1.msra.mxu0 0.0
    %181 = vmatprep.subr.mxu0 0.0
    %182 = vmatpush1.msra.mxu0 0.0
    %183 = vmatprep.subr.mxu0 0.0
    %184 = vmatpush1.msra.mxu0 0.0
    %185 = vmatprep.subr.mxu0 0.0
    %186 = vmatpush1.msra.mxu0 0.0
    %187 = vmatprep.subr.mxu0 0.0
    %188 = vmatpush1.msra.mxu0 0.0
    %189 = vmatprep.subr.mxu0 0.0
    %190 = vmatpush1.msra.mxu0 0.0
    %191 = vmatprep.subr.mxu0 0.0
    %192 = vmatpush1.msra.mxu0 0.0
    %193 = vmatprep.subr.mxu0 0.0
    %194 = vmatpush1.msra.mxu0 0.0
    %195 = vmatprep.subr.mxu0 0.0
    %196 = vmatpush1.msra.mxu0 0.0
    %197 = vmatprep.subr.mxu0 0.0
    %198 = vmatpush1.msra.mxu0 0.0
    %199 = vmatprep.mubr.f32.mxu0 0.0
    %200 = vmatmul.mubr.f32.gmra.mrb[0].mxu0 %v129
    %v201 = vpop.f32.mrb[0].mxu0
    %v202 = vadd.f32 %v122, %v201
    %v203 = vpop.f32.mrb[0].mxu0
    %v204 = vadd.f32 %v124, %v203
    %205 = vdwg.mxu0
    %207 = vset.pattern.permute.xlu0 0
    %208 = vperm.xlu0 %207, %v32
    %v209 = vpop.permute.xlu0 %208
    %v211 = vadd.f32 %v202, %v209
    %v212 = vadd.f32 %v204, %v209
    %213 = vst [vmem:[#allocation2] sm:$0xff] %v211
    %214 = vst [vmem:[#allocation2 + $0x8] sm:$0xff] %v212
    %s215 = scalar_lea.vmem %s0, 8
    %v216 = vld [vmem:[%s215] sm:$0xff]
    %s217 = scalar_lea.vmem %s1, 8
    %v218 = vld [vmem:[%s217] sm:$0xff]
    %v220 = vcombine.high %v218, %v218
    %v222 = vsel %vm37, %v218, 0.0
    %v223 = vsel %vm38, %v220, 0.0
    %v225 = vsel %vm48, %v222, 0
    %v228 = vsel %vm48, %v223, 0
    %230 = vmatprep.subr.mxu0 %v228
    %231 = vmatpush1.msra.mxu0 %v225
    %232 = vmatprep.subr.mxu0 0.0
    %233 = vmatpush1.msra.mxu0 0.0
    %234 = vmatprep.subr.mxu0 0.0
    %235 = vmatpush1.msra.mxu0 0.0
    %236 = vmatprep.subr.mxu0 0.0
    %237 = vmatpush1.msra.mxu0 0.0
    %238 = vmatprep.subr.mxu0 0.0
    %239 = vmatpush1.msra.mxu0 0.0
    %240 = vmatprep.subr.mxu0 0.0
    %241 = vmatpush1.msra.mxu0 0.0
    %242 = vmatprep.subr.mxu0 0.0
    %243 = vmatpush1.msra.mxu0 0.0
    %244 = vmatprep.subr.mxu0 0.0
    %245 = vmatpush1.msra.mxu0 0.0
    %246 = vmatprep.subr.mxu0 0.0
    %247 = vmatpush1.msra.mxu0 0.0
    %248 = vmatprep.subr.mxu0 0.0
    %249 = vmatpush1.msra.mxu0 0.0
    %250 = vmatprep.subr.mxu0 0.0
    %251 = vmatpush1.msra.mxu0 0.0
    %252 = vmatprep.subr.mxu0 0.0
    %253 = vmatpush1.msra.mxu0 0.0
    %254 = vmatprep.subr.mxu0 0.0
    %255 = vmatpush1.msra.mxu0 0.0
    %256 = vmatprep.subr.mxu0 0.0
    %257 = vmatpush1.msra.mxu0 0.0
    %258 = vmatprep.subr.mxu0 0.0
    %259 = vmatpush1.msra.mxu0 0.0
    %260 = vmatprep.subr.mxu0 0.0
    %261 = vmatpush1.msra.mxu0 0.0
    %262 = vmatprep.subr.mxu0 0.0
    %263 = vmatpush1.msra.mxu0 0.0
    %264 = vmatprep.subr.mxu0 0.0
    %265 = vmatpush1.msra.mxu0 0.0
    %266 = vmatprep.subr.mxu0 0.0
    %267 = vmatpush1.msra.mxu0 0.0
    %268 = vmatprep.subr.mxu0 0.0
    %269 = vmatpush1.msra.mxu0 0.0
    %270 = vmatprep.subr.mxu0 0.0
    %271 = vmatpush1.msra.mxu0 0.0
    %272 = vmatprep.subr.mxu0 0.0
    %273 = vmatpush1.msra.mxu0 0.0
    %274 = vmatprep.subr.mxu0 0.0
    %275 = vmatpush1.msra.mxu0 0.0
    %276 = vmatprep.subr.mxu0 0.0
    %277 = vmatpush1.msra.mxu0 0.0
    %278 = vmatprep.subr.mxu0 0.0
    %279 = vmatpush1.msra.mxu0 0.0
    %280 = vmatprep.subr.mxu0 0.0
    %281 = vmatpush1.msra.mxu0 0.0
    %282 = vmatprep.subr.mxu0 0.0
    %283 = vmatpush1.msra.mxu0 0.0
    %284 = vmatprep.subr.mxu0 0.0
    %285 = vmatpush1.msra.mxu0 0.0
    %286 = vmatprep.subr.mxu0 0.0
    %287 = vmatpush1.msra.mxu0 0.0
    %288 = vmatprep.subr.mxu0 0.0
    %289 = vmatpush1.msra.mxu0 0.0
    %290 = vmatprep.subr.mxu0 0.0
    %291 = vmatpush1.msra.mxu0 0.0
    %292 = vmatprep.subr.mxu0 0.0
    %293 = vmatpush1.msra.mxu0 0.0
    %294 = vmatprep.mubr.f32.mxu0 0.0
    %295 = vmatmul.mubr.f32.gmra.mrb[0].mxu0 %v46
    %v296 = vpop.f32.mrb[0].mxu0
    %v297 = vadd.f32 0.0, %v296
    %v298 = vpop.f32.mrb[0].mxu0
    %v299 = vadd.f32 0.0, %v298
    %300 = vdwg.mxu0
    %v302 = vcombine.high %v216, %v216
    %v303 = vsel %vm48, %v216, 0
    %v305 = vsel %vm48, %v302, 0
    %307 = vmatprep.subr.mxu0 %v305
    %308 = vmatpush1.msra.mxu0 %v303
    %309 = vmatprep.subr.mxu0 0.0
    %310 = vmatpush1.msra.mxu0 0.0
    %311 = vmatprep.subr.mxu0 0.0
    %312 = vmatpush1.msra.mxu0 0.0
    %313 = vmatprep.subr.mxu0 0.0
    %314 = vmatpush1.msra.mxu0 0.0
    %315 = vmatprep.subr.mxu0 0.0
    %316 = vmatpush1.msra.mxu0 0.0
    %317 = vmatprep.subr.mxu0 0.0
    %318 = vmatpush1.msra.mxu0 0.0
    %319 = vmatprep.subr.mxu0 0.0
    %320 = vmatpush1.msra.mxu0 0.0
    %321 = vmatprep.subr.mxu0 0.0
    %322 = vmatpush1.msra.mxu0 0.0
    %323 = vmatprep.subr.mxu0 0.0
    %324 = vmatpush1.msra.mxu0 0.0
    %325 = vmatprep.subr.mxu0 0.0
    %326 = vmatpush1.msra.mxu0 0.0
    %327 = vmatprep.subr.mxu0 0.0
    %328 = vmatpush1.msra.mxu0 0.0
    %329 = vmatprep.subr.mxu0 0.0
    %330 = vmatpush1.msra.mxu0 0.0
    %331 = vmatprep.subr.mxu0 0.0
    %332 = vmatpush1.msra.mxu0 0.0
    %333 = vmatprep.subr.mxu0 0.0
    %334 = vmatpush1.msra.mxu0 0.0
    %335 = vmatprep.subr.mxu0 0.0
    %336 = vmatpush1.msra.mxu0 0.0
    %337 = vmatprep.subr.mxu0 0.0
    %338 = vmatpush1.msra.mxu0 0.0
    %339 = vmatprep.subr.mxu0 0.0
    %340 = vmatpush1.msra.mxu0 0.0
    %341 = vmatprep.subr.mxu0 0.0
    %342 = vmatpush1.msra.mxu0 0.0
    %343 = vmatprep.subr.mxu0 0.0
    %344 = vmatpush1.msra.mxu0 0.0
    %345 = vmatprep.subr.mxu0 0.0
    %346 = vmatpush1.msra.mxu0 0.0
    %347 = vmatprep.subr.mxu0 0.0
    %348 = vmatpush1.msra.mxu0 0.0
    %349 = vmatprep.subr.mxu0 0.0
    %350 = vmatpush1.msra.mxu0 0.0
    %351 = vmatprep.subr.mxu0 0.0
    %352 = vmatpush1.msra.mxu0 0.0
    %353 = vmatprep.subr.mxu0 0.0
    %354 = vmatpush1.msra.mxu0 0.0
    %355 = vmatprep.subr.mxu0 0.0
    %356 = vmatpush1.msra.mxu0 0.0
    %357 = vmatprep.subr.mxu0 0.0
    %358 = vmatpush1.msra.mxu0 0.0
    %359 = vmatprep.subr.mxu0 0.0
    %360 = vmatpush1.msra.mxu0 0.0
    %361 = vmatprep.subr.mxu0 0.0
    %362 = vmatpush1.msra.mxu0 0.0
    %363 = vmatprep.subr.mxu0 0.0
    %364 = vmatpush1.msra.mxu0 0.0
    %365 = vmatprep.subr.mxu0 0.0
    %366 = vmatpush1.msra.mxu0 0.0
    %367 = vmatprep.subr.mxu0 0.0
    %368 = vmatpush1.msra.mxu0 0.0
    %369 = vmatprep.subr.mxu0 0.0
    %370 = vmatpush1.msra.mxu0 0.0
    %371 = vmatprep.mubr.f32.mxu0 0.0
    %372 = vmatmul.mubr.f32.gmra.mrb[0].mxu0 %v129
    %v373 = vpop.f32.mrb[0].mxu0
    %v374 = vadd.f32 %v297, %v373
    %v375 = vpop.f32.mrb[0].mxu0
    %v376 = vadd.f32 %v299, %v375
    %377 = vdwg.mxu0
    %v378 = vadd.f32 %v374, %v209
    %v379 = vadd.f32 %v376, %v209
    %s380 = scalar_lea.vmem [#allocation2], 16
    %381 = vst [vmem:[%s380] sm:$0xff] %v378
    %382 = vst [vmem:[%s380 + $0x8] sm:$0xff] %v379
    // Predicated region
    $region22: #{tpu_custom_call.1} parent=1 // pred_check
      _
    $region23: #{tpu_custom_call.1} parent=1 // pred_check_branch
      %384 = sbr.rel (0) target = $region25
    $region24: #{tpu_custom_call.1} parent=1 // pred_region
      %s386 = ssub.s32 512, 512
      %387 = vsyncadd [#allocation3], %s386
      %s388 = sshll.u32 [#allocation2], 4
      %s389 = int_to_ptr.vmem [resolvable:$true] %s388
      %394 = dma.vmem_to_hbm [thread:$0]  %s389, 512, %s5, [#allocation3], 256, 256, 16
    $region25: #{tpu_custom_call.1} parent=1 // pred_fallthru
      _
    // Predicated region
    $region26: #{tpu_custom_call.1} parent=1 // pred_check
      _
    $region27: #{tpu_custom_call.1} parent=1 // pred_check_branch
      %396 = sbr.rel (0) target = $region29
    $region28: #{tpu_custom_call.1} parent=1 // pred_region
      %397 = dma.done [#allocation3], 512
    $region29: #{tpu_custom_call.1} parent=1 // pred_fallthru
      _
    %398 = vsyncpa [#allocation3], 1

</llo_original>
